<compile_context>
chip_gen: v6e
topology: v6e:2x2x1
jax: 0.10.0
libtpu: 0.0.40
codegen_flags: <defaults>
</compile_context>

<pallas_src>
import functools

import jax
import jax.numpy as jnp
from jax.experimental import pallas as pl
from jax.experimental.pallas import tpu as pltpu

SLAB_LANES = 128      # lane-dense combined output slab width
PROB_OFFSET = 64      # probs start at this lane inside the slab (requires C <= 64)


def _prelu(x, alpha):
    # PReLU with a single shared parameter (PyTorch default num_parameters=1).
    return jnp.where(x > 0, x, alpha * x)


def guesser_kernel(alphas_ref,                       # SMEM (3,) f32: PReLU alphas
                   x_ref,                            # VMEM (TILE_B, D)
                   w1_ref, b1_ref,                   # VMEM (D, H), (1, H)
                   w2_ref, b2_ref,                   # VMEM (H, H), (1, H)
                   w3_ref, b3_ref,                   # VMEM (H, H), (1, H)
                   wl_ref, bl_ref,                   # VMEM (H, 128), (1, 128)  (zero-padded)
                   out_ref,                          # VMEM (TILE_B, 128) combined slab
                   *, num_classes):
    x = x_ref[...]

    # layer1: Linear + PReLU (f32 accumulation, f32 activation math).
    h = jnp.dot(x, w1_ref[...], preferred_element_type=jnp.float32) + b1_ref[...]
    h = _prelu(h, alphas_ref[0])
    # layer2 / layer3.  The astype is a no-op when weights are f32 (same-dtype
    # convert is dropped at trace time -> no VPU pack cost on v5e); with bf16
    # weights it keeps matmul operands bf16 for the v6e/v7x MXU fast path.
    h = jnp.dot(h.astype(w2_ref.dtype), w2_ref[...],
                preferred_element_type=jnp.float32) + b2_ref[...]
    h = _prelu(h, alphas_ref[1])
    h = jnp.dot(h.astype(w3_ref.dtype), w3_ref[...],
                preferred_element_type=jnp.float32) + b3_ref[...]
    h = _prelu(h, alphas_ref[2])

    # logits head: class axis zero-padded to a full 128-lane slab (zero weight
    # columns + zero bias) -> lanes [C, 128) of `logits` are exactly 0.
    logits = jnp.dot(h.astype(wl_ref.dtype), wl_ref[...],
                     preferred_element_type=jnp.float32) + bl_ref[...]

    tile_b = logits.shape[0]
    lane = jax.lax.broadcasted_iota(jnp.int32, (tile_b, SLAB_LANES), 1)

    if num_classes == 2:
        # Exact two-class softmax via the sigmoid identity: no cross-lane
        # max/sum reductions, rows sum to exactly 1.
        d = logits[:, 0:1] - logits[:, 1:2]          # l0 - l1
        p1 = 1.0 / (1.0 + jnp.exp(d))                # softmax prob of class 1
        p0 = 1.0 - p1
        slab = jnp.where(lane == PROB_OFFSET, p0,
                         jnp.where(lane == PROB_OFFSET + 1, p1, logits))
    else:
        # Generic masked softmax over the real classes; padded lanes get -1e30
        # only inside the softmax math (stored logits stay zero there).
        z = logits + jnp.where(lane < num_classes, 0.0, -1e30)
        m = jnp.max(z, axis=1, keepdims=True)
        e = jnp.exp(z - m)                           # padded lanes -> 0
        probs = e * pl.reciprocal(jnp.sum(e, axis=1, keepdims=True), approx=True)
        # Place probs at lanes [PROB_OFFSET, PROB_OFFSET+C); lanes beyond C are 0
        # in both `logits` and rolled `probs`, so a plain add composes the slab.
        slab = logits + pltpu.roll(probs, shift=PROB_OFFSET, axis=1)

    out_ref[...] = slab.astype(out_ref.dtype)


def guesser_forward(x, params, *, tile_b=4096, out_dtype=jnp.float32,
                    return_padded=False):
    """Fused Guesser forward.

    params: dict with w1,b1,w2,b2,w3,b3,wl,bl (weights as (in,out)), alphas (3,).
    Weights / x may be f32 or bf16 (matmul operands); biases, alphas and all
    activation math are kept in f32.

    Returns (logits, probs), each (B, C) of dtype `out_dtype`, or — with
    return_padded=True — the raw (B, 128) slab (logits in lanes [0, C), probs in
    lanes [64, 64+C), zeros elsewhere) so the consumer can index lanes lazily
    and avoid an extra full-HBM slice pass.
    """
    B, D = x.shape
    H = params["w1"].shape[1]
    C = params["wl"].shape[1]
    assert C <= PROB_OFFSET, "combined-slab layout requires num_classes <= 64"

    # Lane-dense head: zero-pad the class axis of the head weight/bias to 128.
    wl = params["wl"]
    wl_p = jnp.zeros((H, SLAB_LANES), wl.dtype).at[:, :C].set(wl)
    bl_p = jnp.zeros((1, SLAB_LANES), jnp.float32).at[:, :C].set(
        params["bl"].astype(jnp.float32).reshape(1, C))

    b1 = params["b1"].astype(jnp.float32).reshape(1, H)
    b2 = params["b2"].astype(jnp.float32).reshape(1, H)
    b3 = params["b3"].astype(jnp.float32).reshape(1, H)
    alphas = params["alphas"].astype(jnp.float32)

    # ---- Batch tile selection -------------------------------------------------
    # Per-grid-step overhead is ~0.35us and per-step compute is tiny, so prefer
    # big tiles; but (a) keep >= 2 grid steps so v7x's 2 TensorCores both get
    # work, and (b) cap VMEM (double-buffered x tile + output slab) under
    # ~12 MiB so we stay inside v5e's 16 MiB default scoped VMEM with no flags.
    out_itemsize = jnp.dtype(out_dtype).itemsize
    bytes_per_row = 2 * D * x.dtype.itemsize + 2 * SLAB_LANES * out_itemsize
    vmem_budget = 12 * 1024 * 1024
    max_rows = max(8, (vmem_budget // bytes_per_row) // 8 * 8)

    if B < 16:
        TILE_B = B                                   # single tile covers the whole batch
    else:
        TILE_B = min(tile_b, B)
        if TILE_B >= B:
            # Guarantee >= 2 grid steps (megacore sharding on v7x).
            TILE_B = (((B + 1) // 2) + 7) // 8 * 8
        TILE_B = max(8, (TILE_B // 8) * 8)
        TILE_B = min(TILE_B, max_rows)
    num_tiles = pl.cdiv(B, TILE_B)
    # NOTE: if B is not a multiple of TILE_B, the last partial tile computes on
    # unspecified out-of-bounds rows that are discarded on writeback; rows are
    # independent so this is safe (no cross-row reduction in the kernel).

    def tiled(shape):
        return pl.BlockSpec(shape, lambda i: (i, 0))

    def resident(shape):
        # Constant block index -> stays resident in VMEM across all batch tiles.
        # (Weights total only a few tens of KiB here, so the second pipeline
        #  buffer the runtime allocates for them is negligible VMEM.)
        return pl.BlockSpec(shape, lambda i: (0, 0))

    in_specs = [
        pl.BlockSpec(memory_space=pltpu.SMEM),            # alphas (scalars)
        tiled((TILE_B, D)),                               # x tile
        resident((D, H)), resident((1, H)),               # w1, b1
        resident((H, H)), resident((1, H)),               # w2, b2
        resident((H, H)), resident((1, H)),               # w3, b3
        resident((H, SLAB_LANES)), resident((1, SLAB_LANES)),  # wl, bl (padded)
    ]
    out_specs = tiled((TILE_B, SLAB_LANES))
    out_shape = jax.ShapeDtypeStruct((B, SLAB_LANES), out_dtype)

    weight_bytes = sum(int(params[k].size) * params[k].dtype.itemsize
                       for k in ("w1", "w2", "w3", "wl"))
    cost = pl.CostEstimate(
        flops=2 * B * (D * H + 2 * H * H + H * SLAB_LANES),
        transcendentals=B * (1 if C == 2 else SLAB_LANES + 1),
        bytes_accessed=(int(x.size) * x.dtype.itemsize + weight_bytes
                        + (3 * H + SLAB_LANES + 3) * 4
                        + B * SLAB_LANES * out_itemsize),
    )

    slab = pl.pallas_call(
        functools.partial(guesser_kernel, num_classes=C),
        out_shape=out_shape,
        grid=(num_tiles,),
        in_specs=in_specs,
        out_specs=out_specs,
        compiler_params=pltpu.CompilerParams(
            dimension_semantics=("parallel",)),            # v7x: 2 TCs share batch
        cost_estimate=cost,
    )(alphas, x,
      params["w1"], b1,
      params["w2"], b2,
      params["w3"], b3,
      wl_p, bl_p)

    if return_padded:
        return slab
    logits = slab[:, :C]
    probs = slab[:, PROB_OFFSET:PROB_OFFSET + C]
    return logits, probs


def init_params(key, state_dim, hidden_dim, num_classes=2):
    """Deterministic synthetic init (uniform, roughly matching torch's Linear init scale)."""
    ks = jax.random.split(key, 8)

    def lin(kw, kb, fan_in, fan_out):
        bound = 1.0 / jnp.sqrt(fan_in)
        w = jax.random.uniform(kw, (fan_in, fan_out), jnp.float32, -bound, bound)
        b = jax.random.uniform(kb, (1, fan_out), jnp.float32, -bound, bound)
        return w, b

    w1, b1 = lin(ks[0], ks[1], state_dim, hidden_dim)
    w2, b2 = lin(ks[2], ks[3], hidden_dim, hidden_dim)
    w3, b3 = lin(ks[4], ks[5], hidden_dim, hidden_dim)
    wl, bl = lin(ks[6], ks[7], hidden_dim, num_classes)
    alphas = jnp.full((3,), 0.25, dtype=jnp.float32)  # PReLU default init

    return dict(w1=w1, b1=b1, w2=w2, b2=b2, w3=w3, b3=b3, wl=wl, bl=bl,
                alphas=alphas)


def reference_forward(x, p):
    """Pure-JAX reference matching the kernel's dtype handling."""
    dt = p["w1"].dtype

    def prelu(v, a):
        return jnp.where(v > 0, v, a * v)

    def lin(h, w, b):
        return (jnp.dot(h.astype(dt), w, preferred_element_type=jnp.float32)
                + b.astype(jnp.float32))

    h = prelu(lin(x, p["w1"], p["b1"]), p["alphas"][0])
    h = prelu(lin(h, p["w2"], p["b2"]), p["alphas"][1])
    h = prelu(lin(h, p["w3"], p["b3"]), p["alphas"][2])
    logits = lin(h, p["wl"], p["bl"])
    probs = jax.nn.softmax(logits, axis=1)
    return logits, probs


if __name__ == "__main__":
    key = jax.random.PRNGKey(0)
    k_x, k_p = jax.random.split(key)

    batch, state_dim, hidden_dim, num_classes = 64, 16, 32, 2
    x = jax.random.normal(k_x, (batch, state_dim), dtype=jnp.float32)
    params = init_params(k_p, state_dim, hidden_dim, num_classes)
    ref_logits, ref_probs = reference_forward(x, params)

    # --- default path: f32, TILE_B=32 -> 2 batch tiles (megacore-friendly) ---
    logits, probs = guesser_forward(x, params)
    jax.block_until_ready((logits, probs))
    assert logits.shape == (batch, num_classes) and probs.shape == (batch, num_classes)
    assert jnp.allclose(logits, ref_logits, atol=1e-4, rtol=1e-4)
    assert jnp.allclose(probs, ref_probs, atol=1e-4, rtol=1e-4)
    assert jnp.allclose(jnp.sum(probs, axis=1), 1.0, atol=1e-5)

    # --- small tile to exercise the multi-step batch pipeline (4 steps) ---
    logits4, probs4 = guesser_forward(x, params, tile_b=16)
    jax.block_until_ready((logits4, probs4))
    assert jnp.allclose(logits4, ref_logits, atol=1e-4, rtol=1e-4)
    assert jnp.allclose(probs4, ref_probs, atol=1e-4, rtol=1e-4)

    # --- padded-slab return (no wrapper slice pass; consumer indexes lanes) ---
    slab = guesser_forward(x, params, return_padded=True)
    jax.block_until_ready(slab)
    assert slab.shape == (batch, SLAB_LANES)
    assert jnp.allclose(slab[:, :num_classes], ref_logits, atol=1e-4, rtol=1e-4)
    assert jnp.allclose(slab[:, PROB_OFFSET:PROB_OFFSET + num_classes],
                        ref_probs, atol=1e-4, rtol=1e-4)

    # --- bf16 matmul operands + bf16 output slab (min HBM traffic) ---
    params_bf16 = dict(params)
    for k in ("w1", "w2", "w3", "wl"):
        params_bf16[k] = params[k].astype(jnp.bfloat16)
    x_bf16 = x.astype(jnp.bfloat16)

    logits16, probs16 = guesser_forward(x_bf16, params_bf16, out_dtype=jnp.bfloat16)
    jax.block_until_ready((logits16, probs16))
    ref_logits16, ref_probs16 = reference_forward(x_bf16, params_bf16)
    assert logits16.dtype == jnp.bfloat16 and probs16.dtype == jnp.bfloat16
    assert jnp.allclose(logits16.astype(jnp.float32), ref_logits16, atol=2e-2, rtol=2e-2)
    assert jnp.allclose(probs16.astype(jnp.float32), ref_probs16, atol=2e-2, rtol=2e-2)

    print("KERNEL_OK")
</pallas_src>

<mosaic_0001>
module attributes {stable_mosaic.version = 11 : i64} {
  func.func @guesser_kernel(%arg0: i32, %arg1: memref<3xf32, #tpu.memory_space<smem>>, %arg2: memref<32x16xf32, #tpu.memory_space<vmem>>, %arg3: memref<16x32xf32, #tpu.memory_space<vmem>>, %arg4: memref<1x32xf32, #tpu.memory_space<vmem>>, %arg5: memref<32x32xf32, #tpu.memory_space<vmem>>, %arg6: memref<1x32xf32, #tpu.memory_space<vmem>>, %arg7: memref<32x32xf32, #tpu.memory_space<vmem>>, %arg8: memref<1x32xf32, #tpu.memory_space<vmem>>, %arg9: memref<32x128xf32, #tpu.memory_space<vmem>>, %arg10: memref<1x128xf32, #tpu.memory_space<vmem>>, %arg11: memref<32x128xf32, #tpu.memory_space<vmem>>) attributes {dimension_semantics = [#tpu.dimension_semantics<parallel>], iteration_bounds = array<i64: 2>, scalar_prefetch = 0 : i64, scratch_operands = 0 : i64, tpu.core_type = #tpu.core_type<tc>, window_params = [{transform_indices = @transform_0, window_bounds = array<i64: 3>}, {transform_indices = @transform_1, window_bounds = array<i64: 32, 16>}, {pipeline_mode = #tpu.pipeline_mode<synchronous>, transform_indices = @transform_2, window_bounds = array<i64: 16, 32>}, {pipeline_mode = #tpu.pipeline_mode<synchronous>, transform_indices = @transform_3, window_bounds = array<i64: 1, 32>}, {pipeline_mode = #tpu.pipeline_mode<synchronous>, transform_indices = @transform_4, window_bounds = array<i64: 32, 32>}, {pipeline_mode = #tpu.pipeline_mode<synchronous>, transform_indices = @transform_5, window_bounds = array<i64: 1, 32>}, {pipeline_mode = #tpu.pipeline_mode<synchronous>, transform_indices = @transform_6, window_bounds = array<i64: 32, 32>}, {pipeline_mode = #tpu.pipeline_mode<synchronous>, transform_indices = @transform_7, window_bounds = array<i64: 1, 32>}, {pipeline_mode = #tpu.pipeline_mode<synchronous>, transform_indices = @transform_8, window_bounds = array<i64: 32, 128>}, {pipeline_mode = #tpu.pipeline_mode<synchronous>, transform_indices = @transform_9, window_bounds = array<i64: 1, 128>}, {transform_indices = @transform_10, window_bounds = array<i64: 32, 128>}]} {
    %c0 = arith.constant 0 : index
    %c0_0 = arith.constant 0 : index
    %0 = vector.load %arg2[%c0, %c0_0] : memref<32x16xf32, #tpu.memory_space<vmem>>, vector<32x16xf32>
    %c0_1 = arith.constant 0 : index
    %c0_2 = arith.constant 0 : index
    %1 = vector.load %arg3[%c0_1, %c0_2] : memref<16x32xf32, #tpu.memory_space<vmem>>, vector<16x32xf32>
    %cst = arith.constant dense<0.000000e+00> : vector<32x32xf32>
    %2 = tpu.matmul %0, %1, %cst {dimension_numbers = #tpu.dot_dimension_numbers<[1], [0], [0], [1], [0, 0, 1, 1], [], []>} : vector<32x16xf32>, vector<16x32xf32>, vector<32x32xf32> -> vector<32x32xf32>
    %c0_3 = arith.constant 0 : index
    %c0_4 = arith.constant 0 : index
    %3 = vector.load %arg4[%c0_3, %c0_4] : memref<1x32xf32, #tpu.memory_space<vmem>>, vector<1x32xf32>
    %4 = vector.broadcast %3 : vector<1x32xf32> to vector<32x32xf32>
    %5 = arith.addf %2, %4 : vector<32x32xf32>
    %c0_5 = arith.constant 0 : index
    %6 = memref.load %arg1[%c0_5] : memref<3xf32, #tpu.memory_space<smem>>
    %cst_6 = arith.constant 0.000000e+00 : f32
    %7 = vector.broadcast %cst_6 : f32 to vector<32x32xf32>
    %8 = arith.cmpf ogt, %5, %7 : vector<32x32xf32>
    %9 = vector.broadcast %6 : f32 to vector<32x32xf32>
    %10 = arith.mulf %9, %5 : vector<32x32xf32>
    %11 = arith.select %8, %5, %10 : vector<32x32xi1>, vector<32x32xf32>
    %c0_7 = arith.constant 0 : index
    %c0_8 = arith.constant 0 : index
    %12 = vector.load %arg5[%c0_7, %c0_8] : memref<32x32xf32, #tpu.memory_space<vmem>>, vector<32x32xf32>
    %cst_9 = arith.constant dense<0.000000e+00> : vector<32x32xf32>
    %13 = tpu.matmul %11, %12, %cst_9 {dimension_numbers = #tpu.dot_dimension_numbers<[1], [0], [0], [1], [0, 0, 1, 1], [], []>} : vector<32x32xf32>, vector<32x32xf32>, vector<32x32xf32> -> vector<32x32xf32>
    %c0_10 = arith.constant 0 : index
    %c0_11 = arith.constant 0 : index
    %14 = vector.load %arg6[%c0_10, %c0_11] : memref<1x32xf32, #tpu.memory_space<vmem>>, vector<1x32xf32>
    %15 = vector.broadcast %14 : vector<1x32xf32> to vector<32x32xf32>
    %16 = arith.addf %13, %15 : vector<32x32xf32>
    %c1 = arith.constant 1 : index
    %17 = memref.load %arg1[%c1] : memref<3xf32, #tpu.memory_space<smem>>
    %cst_12 = arith.constant 0.000000e+00 : f32
    %18 = vector.broadcast %cst_12 : f32 to vector<32x32xf32>
    %19 = arith.cmpf ogt, %16, %18 : vector<32x32xf32>
    %20 = vector.broadcast %17 : f32 to vector<32x32xf32>
    %21 = arith.mulf %20, %16 : vector<32x32xf32>
    %22 = arith.select %19, %16, %21 : vector<32x32xi1>, vector<32x32xf32>
    %c0_13 = arith.constant 0 : index
    %c0_14 = arith.constant 0 : index
    %23 = vector.load %arg7[%c0_13, %c0_14] : memref<32x32xf32, #tpu.memory_space<vmem>>, vector<32x32xf32>
    %cst_15 = arith.constant dense<0.000000e+00> : vector<32x32xf32>
    %24 = tpu.matmul %22, %23, %cst_15 {dimension_numbers = #tpu.dot_dimension_numbers<[1], [0], [0], [1], [0, 0, 1, 1], [], []>} : vector<32x32xf32>, vector<32x32xf32>, vector<32x32xf32> -> vector<32x32xf32>
    %c0_16 = arith.constant 0 : index
    %c0_17 = arith.constant 0 : index
    %25 = vector.load %arg8[%c0_16, %c0_17] : memref<1x32xf32, #tpu.memory_space<vmem>>, vector<1x32xf32>
    %26 = vector.broadcast %25 : vector<1x32xf32> to vector<32x32xf32>
    %27 = arith.addf %24, %26 : vector<32x32xf32>
    %c2 = arith.constant 2 : index
    %28 = memref.load %arg1[%c2] : memref<3xf32, #tpu.memory_space<smem>>
    %cst_18 = arith.constant 0.000000e+00 : f32
    %29 = vector.broadcast %cst_18 : f32 to vector<32x32xf32>
    %30 = arith.cmpf ogt, %27, %29 : vector<32x32xf32>
    %31 = vector.broadcast %28 : f32 to vector<32x32xf32>
    %32 = arith.mulf %31, %27 : vector<32x32xf32>
    %33 = arith.select %30, %27, %32 : vector<32x32xi1>, vector<32x32xf32>
    %c0_19 = arith.constant 0 : index
    %c0_20 = arith.constant 0 : index
    %34 = vector.load %arg9[%c0_19, %c0_20] : memref<32x128xf32, #tpu.memory_space<vmem>>, vector<32x128xf32>
    %cst_21 = arith.constant dense<0.000000e+00> : vector<32x128xf32>
    %35 = tpu.matmul %33, %34, %cst_21 {dimension_numbers = #tpu.dot_dimension_numbers<[1], [0], [0], [1], [0, 0, 1, 1], [], []>} : vector<32x32xf32>, vector<32x128xf32>, vector<32x128xf32> -> vector<32x128xf32>
    %c0_22 = arith.constant 0 : index
    %c0_23 = arith.constant 0 : index
    %36 = vector.load %arg10[%c0_22, %c0_23] : memref<1x128xf32, #tpu.memory_space<vmem>>, vector<1x128xf32>
    %37 = vector.broadcast %36 : vector<1x128xf32> to vector<32x128xf32>
    %38 = arith.addf %35, %37 : vector<32x128xf32>
    %39 = tpu.iota {dimensions = array<i32: 1>} : vector<32x128xi32>
    %40 = vector.extract_strided_slice %38 {offsets = [0, 0], sizes = [32, 1], strides = [1, 1]} : vector<32x128xf32> to vector<32x1xf32>
    %41 = vector.extract_strided_slice %38 {offsets = [0, 1], sizes = [32, 1], strides = [1, 1]} : vector<32x128xf32> to vector<32x1xf32>
    %42 = arith.subf %40, %41 : vector<32x1xf32>
    %43 = math.exp %42 : vector<32x1xf32>
    %cst_24 = arith.constant 1.000000e+00 : f32
    %44 = vector.broadcast %cst_24 : f32 to vector<32x1xf32>
    %45 = arith.addf %44, %43 : vector<32x1xf32>
    %cst_25 = arith.constant 1.000000e+00 : f32
    %46 = vector.broadcast %cst_25 : f32 to vector<32x1xf32>
    %47 = arith.divf %46, %45 : vector<32x1xf32>
    %cst_26 = arith.constant 1.000000e+00 : f32
    %48 = vector.broadcast %cst_26 : f32 to vector<32x1xf32>
    %49 = arith.subf %48, %47 : vector<32x1xf32>
    %c64_i32 = arith.constant 64 : i32
    %50 = vector.broadcast %c64_i32 : i32 to vector<32x128xi32>
    %51 = arith.cmpi eq, %39, %50 : vector<32x128xi32>
    %c65_i32 = arith.constant 65 : i32
    %52 = vector.broadcast %c65_i32 : i32 to vector<32x128xi32>
    %53 = arith.cmpi eq, %39, %52 : vector<32x128xi32>
    %54 = vector.shape_cast %47 : vector<32x1xf32> to vector<32x1xf32>
    %55 = vector.broadcast %54 : vector<32x1xf32> to vector<32x128xf32>
    %56 = arith.select %53, %55, %38 : vector<32x128xi1>, vector<32x128xf32>
    %57 = vector.shape_cast %49 : vector<32x1xf32> to vector<32x1xf32>
    %58 = vector.broadcast %57 : vector<32x1xf32> to vector<32x128xf32>
    %59 = arith.select %51, %58, %56 : vector<32x128xi1>, vector<32x128xf32>
    %c0_27 = arith.constant 0 : index
    %c0_28 = arith.constant 0 : index
    %60 = vector.load %arg11[%c0_27, %c0_28] : memref<32x128xf32, #tpu.memory_space<vmem>>, vector<32x128xf32>
    tpu.vector_store %arg11[%c0_27, %c0_28], %59 {strides = array<i32>} : memref<32x128xf32, #tpu.memory_space<vmem>>, vector<32x128xf32>,
    return
  }
  func.func @transform_0(%arg0: i32) -> i32 {
    %c0_i32 = arith.constant 0 : i32
    %c0_i32_0 = arith.constant 0 : i32
    return %c0_i32 : i32
  }
  func.func @transform_1(%arg0: i32) -> (i32, i32) {
    %c0_i32 = arith.constant 0 : i32
    %c0_i32_0 = arith.constant 0 : i32
    return %arg0, %c0_i32 : i32, i32
  }
  func.func @transform_2(%arg0: i32) -> (i32, i32) {
    %c0_i32 = arith.constant 0 : i32
    %c0_i32_0 = arith.constant 0 : i32
    %c0_i32_1 = arith.constant 0 : i32
    return %c0_i32, %c0_i32_0 : i32, i32
  }
  func.func @transform_3(%arg0: i32) -> (i32, i32) {
    %c0_i32 = arith.constant 0 : i32
    %c0_i32_0 = arith.constant 0 : i32
    %c0_i32_1 = arith.constant 0 : i32
    return %c0_i32, %c0_i32_0 : i32, i32
  }
  func.func @transform_4(%arg0: i32) -> (i32, i32) {
    %c0_i32 = arith.constant 0 : i32
    %c0_i32_0 = arith.constant 0 : i32
    %c0_i32_1 = arith.constant 0 : i32
    return %c0_i32, %c0_i32_0 : i32, i32
  }
  func.func @transform_5(%arg0: i32) -> (i32, i32) {
    %c0_i32 = arith.constant 0 : i32
    %c0_i32_0 = arith.constant 0 : i32
    %c0_i32_1 = arith.constant 0 : i32
    return %c0_i32, %c0_i32_0 : i32, i32
  }
  func.func @transform_6(%arg0: i32) -> (i32, i32) {
    %c0_i32 = arith.constant 0 : i32
    %c0_i32_0 = arith.constant 0 : i32
    %c0_i32_1 = arith.constant 0 : i32
    return %c0_i32, %c0_i32_0 : i32, i32
  }
  func.func @transform_7(%arg0: i32) -> (i32, i32) {
    %c0_i32 = arith.constant 0 : i32
    %c0_i32_0 = arith.constant 0 : i32
    %c0_i32_1 = arith.constant 0 : i32
    return %c0_i32, %c0_i32_0 : i32, i32
  }
  func.func @transform_8(%arg0: i32) -> (i32, i32) {
    %c0_i32 = arith.constant 0 : i32
    %c0_i32_0 = arith.constant 0 : i32
    %c0_i32_1 = arith.constant 0 : i32
    return %c0_i32, %c0_i32_0 : i32, i32
  }
  func.func @transform_9(%arg0: i32) -> (i32, i32) {
    %c0_i32 = arith.constant 0 : i32
    %c0_i32_0 = arith.constant 0 : i32
    %c0_i32_1 = arith.constant 0 : i32
    return %c0_i32, %c0_i32_0 : i32, i32
  }
  func.func @transform_10(%arg0: i32) -> (i32, i32) {
    %c0_i32 = arith.constant 0 : i32
    %c0_i32_0 = arith.constant 0 : i32
    return %arg0, %c0_i32 : i32, i32
  }
}

</mosaic_0001>

<llo_original>
// kernel: tpu_custom_call.1
$region0: #{tpu_custom_call.1}
  #allocation0 [shape = 'u32[]', space=smem, size = 0x4, offset = 0x4, fixed_abs, tag = 'smem constant byte address 0x4 - core index']
  #allocation1 [shape = 'u32[144,128]{1,0:T(1,128)}', space=vmem, size = 0x12000, scoped, tag = 'internal scratch']
  %s0 = inlined_call_operand.hbm [shape: f32[3], index: 0, kind: input, shape index: {}]
  %s1 = inlined_call_operand.vmem [shape: f32[64,16], index: 1, kind: input, shape index: {}]
  %s2 = inlined_call_operand.vmem [shape: f32[16,32], index: 2, kind: input, shape index: {}]
  %s3 = inlined_call_operand.vmem [shape: f32[1,32], index: 3, kind: input, shape index: {}]
  %s4 = inlined_call_operand.vmem [shape: f32[32,32], index: 4, kind: input, shape index: {}]
  %s5 = inlined_call_operand.vmem [shape: f32[1,32], index: 5, kind: input, shape index: {}]
  %s6 = inlined_call_operand.vmem [shape: f32[32,32], index: 6, kind: input, shape index: {}]
  %s7 = inlined_call_operand.vmem [shape: f32[1,32], index: 7, kind: input, shape index: {}]
  %s8 = inlined_call_operand.hbm [shape: f32[32,128], index: 8, kind: input, shape index: {}]
  %s9 = inlined_call_operand.vmem [shape: f32[1,128], index: 9, kind: input, shape index: {}]
  %s10 = inlined_call_operand.hbm [shape: f32[64,128], index: 10, kind: output, shape index: {}]
  %s11 = sld [smem:[#allocation0]]
  $region81: #{tpu_custom_call.1} parent=0
    _
  %s13 = ssub.s32 1, %s11
  %s14 = scalar_select 0, %s13, %s11
  $region1: #{tpu_custom_call.1} parent=0
    #allocation2 [shape = 'u8[512]{0}', space=smem, size = 0x200, scoped, tag = 'input window, operand 0, single buffered']
    #allocation3 [shape = 's32[2]{0}', space=sflag, size = 0x8, scoped, tag = 'scoped memory for tpu_custom_call.1']
    #allocation4 [shape = 's32[2]{0}', space=sflag, size = 0x8, scoped, tag = 'scoped memory for tpu_custom_call.1']
    #allocation5 [shape = 's32[2]{0}', space=sflag, size = 0x8, scoped, tag = 'scoped memory for tpu_custom_call.1']
    #allocation6 [shape = 'u8[16384]{0}', space=vmem, size = 0x4000, scoped, tag = 'input window, operand 8, single buffered']
    #allocation7 [shape = 'u8[32768]{0}', space=vmem, size = 0x8000, scoped, tag = 'output window, operand 0']
    %15 = vsyncpa [#allocation5], 0
    %16 = vsyncpa [#allocation3], 0
    %17 = vsyncpa [#allocation4], 0
    %s18 = scalar_lea.sflag [#allocation4], 1
    %19 = vsyncpa %s18, 0
    loop: start=0, step=1, limit=4
    $region2: #{tpu_custom_call.1} parent=1 // loop_pre_header
      _
    $region3: #{tpu_custom_call.1} parent=1 // loop_header
      %s21 = sphi 0, %s25
      %p22 = scmp.ge.s32.totalorder %s21, 4
      %s29 = sphi 0, %s29
      %s31 = sphi 0, %s29
      %s32 = sphi 0, %s31
      %s46 = sphi 0, %s32
      %s52 = sphi 0, %s54
      %s55 = sphi 0, %s52
      %s56 = sphi 0, %s55
      %s72 = sphi 0, %s56
      %s76 = sphi 0, %s76
      %s78 = sphi 0, %s76
      %s79 = sphi 0, %s78
      %s93 = sphi 0, %s79
      %s97 = sphi 0, %s97
      %s99 = sphi 0, %s97
      %s100 = sphi 0, %s99
      %s114 = sphi 0, %s100
      %s118 = sphi 0, %s118
      %s120 = sphi 0, %s118
      %s121 = sphi 0, %s120
      %s135 = sphi 0, %s121
      %s139 = sphi 0, %s139
      %s141 = sphi 0, %s139
      %s142 = sphi 0, %s141
      %s156 = sphi 0, %s142
      %s160 = sphi 0, %s160
      %s162 = sphi 0, %s160
      %s163 = sphi 0, %s162
      %s177 = sphi 0, %s163
      %s181 = sphi 0, %s181
      %s183 = sphi 0, %s181
      %s184 = sphi 0, %s183
      %s198 = sphi 0, %s184
      %s202 = sphi 0, %s202
      %s204 = sphi 0, %s202
      %s205 = sphi 0, %s204
      %s219 = sphi 0, %s205
      %s223 = sphi 0, %s223
      %s225 = sphi 0, %s223
      %s226 = sphi 0, %s225
      %s240 = sphi 0, %s226
      %s246 = sphi 0, %s248
      %s249 = sphi 0, %s246
      %s250 = sphi 0, %s249
      %s266 = sphi 0, %s250
    $region4: #{tpu_custom_call.1} parent=1 // loop_header_branch
      %24 = sbr.rel (%p22) target = $region8
    $region5: #{tpu_custom_call.1} parent=1 // loop_body
      %s26 = ssub.s32 %s21, 1
      %s27 = ssub.s32 %s21, 2
      %s28 = sadd.s32 %s21, 1
      %s30 = sadd.s32 %s29, 1
      %p33 = scmp.eq.s32.totalorder %s21, 1
      %p34 = scmp.ne.s32.totalorder %s29, %s31
      %p35 = scmp.eq.s32.totalorder %s21, 0
      %p36 = por %p34, %p35
      %p37 = scmp.ne.s32.totalorder %s29, %s31
      %p38 = scmp.eq.s32.totalorder %s26, 1
      %p39 = por %p37, %p38
      %p40 = scmp.ne.s32.totalorder %s31, %s32
      %p41 = scmp.eq.s32.totalorder %s26, 0
      %p42 = por %p40, %p41
      %p43 = scmp.ne.s32.totalorder %s31, %s32
      %p44 = scmp.eq.s32.totalorder %s27, 1
      %p45 = por %p43, %p44
      %p47 = scmp.ne.s32.totalorder %s32, %s46
      %p48 = scmp.eq.s32.totalorder %s27, 0
      %p49 = por %p47, %p48
      %s50 = ssub.s32 %s21, %s28
      %p51 = scmp.eq.s32.totalorder %s50, 0
      %s53 = sadd.s32 %s52, 1
      %s54 = scalar_select %p51, %s52, %s53
      %p57 = pneg %p51
      %p58 = scmp.eq.s32.totalorder %s21, 1
      %p59 = por %p57, %p58
      %p60 = scmp.ne.s32.totalorder %s52, %s55
      %p61 = scmp.eq.s32.totalorder %s21, 0
      %p62 = por %p60, %p61
      %p63 = scmp.ne.s32.totalorder %s52, %s55
      %p64 = scmp.eq.s32.totalorder %s26, 1
      %p65 = por %p63, %p64
      %p66 = scmp.ne.s32.totalorder %s55, %s56
      %p67 = scmp.eq.s32.totalorder %s26, 0
      %p68 = por %p66, %p67
      %p69 = scmp.ne.s32.totalorder %s55, %s56
      %p70 = scmp.eq.s32.totalorder %s27, 1
      %p71 = por %p69, %p70
      %p73 = scmp.ne.s32.totalorder %s56, %s72
      %p74 = scmp.eq.s32.totalorder %s27, 0
      %p75 = por %p73, %p74
      %s77 = sadd.s32 %s76, 1
      %p80 = scmp.eq.s32.totalorder %s21, 1
      %p81 = scmp.ne.s32.totalorder %s76, %s78
      %p82 = scmp.eq.s32.totalorder %s21, 0
      %p83 = por %p81, %p82
      %p84 = scmp.ne.s32.totalorder %s76, %s78
      %p85 = scmp.eq.s32.totalorder %s26, 1
      %p86 = por %p84, %p85
      %p87 = scmp.ne.s32.totalorder %s78, %s79
      %p88 = scmp.eq.s32.totalorder %s26, 0
      %p89 = por %p87, %p88
      %p90 = scmp.ne.s32.totalorder %s78, %s79
      %p91 = scmp.eq.s32.totalorder %s27, 1
      %p92 = por %p90, %p91
      %p94 = scmp.ne.s32.totalorder %s79, %s93
      %p95 = scmp.eq.s32.totalorder %s27, 0
      %p96 = por %p94, %p95
      %s98 = sadd.s32 %s97, 1
      %p101 = scmp.eq.s32.totalorder %s21, 1
      %p102 = scmp.ne.s32.totalorder %s97, %s99
      %p103 = scmp.eq.s32.totalorder %s21, 0
      %p104 = por %p102, %p103
      %p105 = scmp.ne.s32.totalorder %s97, %s99
      %p106 = scmp.eq.s32.totalorder %s26, 1
      %p107 = por %p105, %p106
      %p108 = scmp.ne.s32.totalorder %s99, %s100
      %p109 = scmp.eq.s32.totalorder %s26, 0
      %p110 = por %p108, %p109
      %p111 = scmp.ne.s32.totalorder %s99, %s100
      %p112 = scmp.eq.s32.totalorder %s27, 1
      %p113 = por %p111, %p112
      %p115 = scmp.ne.s32.totalorder %s100, %s114
      %p116 = scmp.eq.s32.totalorder %s27, 0
      %p117 = por %p115, %p116
      %s119 = sadd.s32 %s118, 1
      %p122 = scmp.eq.s32.totalorder %s21, 1
      %p123 = scmp.ne.s32.totalorder %s118, %s120
      %p124 = scmp.eq.s32.totalorder %s21, 0
      %p125 = por %p123, %p124
      %p126 = scmp.ne.s32.totalorder %s118, %s120
      %p127 = scmp.eq.s32.totalorder %s26, 1
      %p128 = por %p126, %p127
      %p129 = scmp.ne.s32.totalorder %s120, %s121
      %p130 = scmp.eq.s32.totalorder %s26, 0
      %p131 = por %p129, %p130
      %p132 = scmp.ne.s32.totalorder %s120, %s121
      %p133 = scmp.eq.s32.totalorder %s27, 1
      %p134 = por %p132, %p133
      %p136 = scmp.ne.s32.totalorder %s121, %s135
      %p137 = scmp.eq.s32.totalorder %s27, 0
      %p138 = por %p136, %p137
      %s140 = sadd.s32 %s139, 1
      %p143 = scmp.eq.s32.totalorder %s21, 1
      %p144 = scmp.ne.s32.totalorder %s139, %s141
      %p145 = scmp.eq.s32.totalorder %s21, 0
      %p146 = por %p144, %p145
      %p147 = scmp.ne.s32.totalorder %s139, %s141
      %p148 = scmp.eq.s32.totalorder %s26, 1
      %p149 = por %p147, %p148
      %p150 = scmp.ne.s32.totalorder %s141, %s142
      %p151 = scmp.eq.s32.totalorder %s26, 0
      %p152 = por %p150, %p151
      %p153 = scmp.ne.s32.totalorder %s141, %s142
      %p154 = scmp.eq.s32.totalorder %s27, 1
      %p155 = por %p153, %p154
      %p157 = scmp.ne.s32.totalorder %s142, %s156
      %p158 = scmp.eq.s32.totalorder %s27, 0
      %p159 = por %p157, %p158
      %s161 = sadd.s32 %s160, 1
      %p164 = scmp.eq.s32.totalorder %s21, 1
      %p165 = scmp.ne.s32.totalorder %s160, %s162
      %p166 = scmp.eq.s32.totalorder %s21, 0
      %p167 = por %p165, %p166
      %p168 = scmp.ne.s32.totalorder %s160, %s162
      %p169 = scmp.eq.s32.totalorder %s26, 1
      %p170 = por %p168, %p169
      %p171 = scmp.ne.s32.totalorder %s162, %s163
      %p172 = scmp.eq.s32.totalorder %s26, 0
      %p173 = por %p171, %p172
      %p174 = scmp.ne.s32.totalorder %s162, %s163
      %p175 = scmp.eq.s32.totalorder %s27, 1
      %p176 = por %p174, %p175
      %p178 = scmp.ne.s32.totalorder %s163, %s177
      %p179 = scmp.eq.s32.totalorder %s27, 0
      %p180 = por %p178, %p179
      %s182 = sadd.s32 %s181, 1
      %p185 = scmp.eq.s32.totalorder %s21, 1
      %p186 = scmp.ne.s32.totalorder %s181, %s183
      %p187 = scmp.eq.s32.totalorder %s21, 0
      %p188 = por %p186, %p187
      %p189 = scmp.ne.s32.totalorder %s181, %s183
      %p190 = scmp.eq.s32.totalorder %s26, 1
      %p191 = por %p189, %p190
      %p192 = scmp.ne.s32.totalorder %s183, %s184
      %p193 = scmp.eq.s32.totalorder %s26, 0
      %p194 = por %p192, %p193
      %p195 = scmp.ne.s32.totalorder %s183, %s184
      %p196 = scmp.eq.s32.totalorder %s27, 1
      %p197 = por %p195, %p196
      %p199 = scmp.ne.s32.totalorder %s184, %s198
      %p200 = scmp.eq.s32.totalorder %s27, 0
      %p201 = por %p199, %p200
      %s203 = sadd.s32 %s202, 1
      %p206 = scmp.eq.s32.totalorder %s21, 1
      %p207 = scmp.ne.s32.totalorder %s202, %s204
      %p208 = scmp.eq.s32.totalorder %s21, 0
      %p209 = por %p207, %p208
      %p210 = scmp.ne.s32.totalorder %s202, %s204
      %p211 = scmp.eq.s32.totalorder %s26, 1
      %p212 = por %p210, %p211
      %p213 = scmp.ne.s32.totalorder %s204, %s205
      %p214 = scmp.eq.s32.totalorder %s26, 0
      %p215 = por %p213, %p214
      %p216 = scmp.ne.s32.totalorder %s204, %s205
      %p217 = scmp.eq.s32.totalorder %s27, 1
      %p218 = por %p216, %p217
      %p220 = scmp.ne.s32.totalorder %s205, %s219
      %p221 = scmp.eq.s32.totalorder %s27, 0
      %p222 = por %p220, %p221
      %s224 = sadd.s32 %s223, 1
      %p227 = scmp.eq.s32.totalorder %s21, 1
      %p228 = scmp.ne.s32.totalorder %s223, %s225
      %p229 = scmp.eq.s32.totalorder %s21, 0
      %p230 = por %p228, %p229
      %p231 = scmp.ne.s32.totalorder %s223, %s225
      %p232 = scmp.eq.s32.totalorder %s26, 1
      %p233 = por %p231, %p232
      %p234 = scmp.ne.s32.totalorder %s225, %s226
      %p235 = scmp.eq.s32.totalorder %s26, 0
      %p236 = por %p234, %p235
      %p237 = scmp.ne.s32.totalorder %s225, %s226
      %p238 = scmp.eq.s32.totalorder %s27, 1
      %p239 = por %p237, %p238
      %p241 = scmp.ne.s32.totalorder %s226, %s240
      %p242 = scmp.eq.s32.totalorder %s27, 0
      %p243 = por %p241, %p242
      %s244 = ssub.s32 %s21, %s28
      %p245 = scmp.eq.s32.totalorder %s244, 0
      %s247 = sadd.s32 %s246, 1
      %s248 = scalar_select %p245, %s246, %s247
      %p251 = pneg %p245
      %p252 = scmp.eq.s32.totalorder %s21, 1
      %p253 = por %p251, %p252
      %p254 = scmp.ne.s32.totalorder %s246, %s249
      %p255 = scmp.eq.s32.totalorder %s21, 0
      %p256 = por %p254, %p255
      %p257 = scmp.ne.s32.totalorder %s246, %s249
      %p258 = scmp.eq.s32.totalorder %s26, 1
      %p259 = por %p257, %p258
      %p260 = scmp.ne.s32.totalorder %s249, %s250
      %p261 = scmp.eq.s32.totalorder %s26, 0
      %p262 = por %p260, %p261
      %p263 = scmp.ne.s32.totalorder %s249, %s250
      %p264 = scmp.eq.s32.totalorder %s27, 1
      %p265 = por %p263, %p264
      %p267 = scmp.ne.s32.totalorder %s250, %s266
      %p268 = scmp.eq.s32.totalorder %s27, 0
      %p269 = por %p267, %p268
      %p270 = scmp.le.s32.totalorder 1, %s21
      %p271 = scmp.lt.s32.totalorder %s21, 3
      %p272 = pnand %p270, %p271
      %p273 = pneg %p272
      // Predicated region
      $region9: #{tpu_custom_call.1} parent=5 // pred_check
        _
      $region10: #{tpu_custom_call.1} parent=5 // pred_check_branch
        %275 = sbr.rel (%p272) target = $region12
      $region11: #{tpu_custom_call.1} parent=5 // pred_region
        %s276 = ssub.s32 %s21, 1
        // Predicated region
        $region13: #{tpu_custom_call.1} parent=11 // pred_check
          %p277 = pneg %p42
        $region14: #{tpu_custom_call.1} parent=11 // pred_check_branch
          %279 = sbr.rel (%p277) target = $region16
        $region15: #{tpu_custom_call.1} parent=11 // pred_region
          %s281 = ssub.s32 16, 16
          %282 = vsyncadd [#allocation5], %s281
          %285 = dma.hbm_to_smem %s0, 16, [#allocation2], [#allocation5]
        $region16: #{tpu_custom_call.1} parent=11 // pred_fallthru
          _
        // Predicated region
        $region17: #{tpu_custom_call.1} parent=11 // pred_check
          %p286 = pneg %p89
        $region18: #{tpu_custom_call.1} parent=11 // pred_check_branch
          %288 = sbr.rel (%p286) target = $region20
        $region19: #{tpu_custom_call.1} parent=11 // pred_region
          _
        $region20: #{tpu_custom_call.1} parent=11 // pred_fallthru
          _
        // Predicated region
        $region21: #{tpu_custom_call.1} parent=11 // pred_check
          %p289 = pneg %p110
        $region22: #{tpu_custom_call.1} parent=11 // pred_check_branch
          %291 = sbr.rel (%p289) target = $region24
        $region23: #{tpu_custom_call.1} parent=11 // pred_region
          _
        $region24: #{tpu_custom_call.1} parent=11 // pred_fallthru
          _
        // Predicated region
        $region25: #{tpu_custom_call.1} parent=11 // pred_check
          %p292 = pneg %p131
        $region26: #{tpu_custom_call.1} parent=11 // pred_check_branch
          %294 = sbr.rel (%p292) target = $region28
        $region27: #{tpu_custom_call.1} parent=11 // pred_region
          _
        $region28: #{tpu_custom_call.1} parent=11 // pred_fallthru
          _
        // Predicated region
        $region29: #{tpu_custom_call.1} parent=11 // pred_check
          %p295 = pneg %p152
        $region30: #{tpu_custom_call.1} parent=11 // pred_check_branch
          %297 = sbr.rel (%p295) target = $region32
        $region31: #{tpu_custom_call.1} parent=11 // pred_region
          _
        $region32: #{tpu_custom_call.1} parent=11 // pred_fallthru
          _
        // Predicated region
        $region33: #{tpu_custom_call.1} parent=11 // pred_check
          %p298 = pneg %p173
        $region34: #{tpu_custom_call.1} parent=11 // pred_check_branch
          %300 = sbr.rel (%p298) target = $region36
        $region35: #{tpu_custom_call.1} parent=11 // pred_region
          _
        $region36: #{tpu_custom_call.1} parent=11 // pred_fallthru
          _
        // Predicated region
        $region37: #{tpu_custom_call.1} parent=11 // pred_check
          %p301 = pneg %p194
        $region38: #{tpu_custom_call.1} parent=11 // pred_check_branch
          %303 = sbr.rel (%p301) target = $region40
        $region39: #{tpu_custom_call.1} parent=11 // pred_region
          _
        $region40: #{tpu_custom_call.1} parent=11 // pred_fallthru
          _
        // Predicated region
        $region41: #{tpu_custom_call.1} parent=11 // pred_check
          %p304 = pneg %p215
        $region42: #{tpu_custom_call.1} parent=11 // pred_check_branch
          %306 = sbr.rel (%p304) target = $region44
        $region43: #{tpu_custom_call.1} parent=11 // pred_region
          %s308 = ssub.s32 512, 512
          %309 = vsyncadd [#allocation3], %s308
          %s310 = sshll.u32 [#allocation6], 4
          %s311 = int_to_ptr.vmem [resolvable:$true] %s310
          %316 = dma.hbm_to_vmem [thread:$0]  %s8, 512, %s311, [#allocation3], 128, 128, 8
        $region44: #{tpu_custom_call.1} parent=11 // pred_fallthru
          _
        // Predicated region
        $region45: #{tpu_custom_call.1} parent=11 // pred_check
          %p317 = pneg %p236
        $region46: #{tpu_custom_call.1} parent=11 // pred_check_branch
          %319 = sbr.rel (%p317) target = $region48
        $region47: #{tpu_custom_call.1} parent=11 // pred_region
          _
        $region48: #{tpu_custom_call.1} parent=11 // pred_fallthru
          _
      $region12: #{tpu_custom_call.1} parent=5 // pred_fallthru
        _
      %p320 = scmp.lt.s32.totalorder %s21, 2
      // Predicated region
      $region49: #{tpu_custom_call.1} parent=5 // pred_check
        %p321 = pneg %p320
      $region50: #{tpu_custom_call.1} parent=5 // pred_check_branch
        %323 = sbr.rel (%p321) target = $region52
      $region51: #{tpu_custom_call.1} parent=5 // pred_region
        // Predicated region
        $region53: #{tpu_custom_call.1} parent=51 // pred_check
          %p324 = pneg %p62
        $region54: #{tpu_custom_call.1} parent=51 // pred_check_branch
          %326 = sbr.rel (%p324) target = $region56
        $region55: #{tpu_custom_call.1} parent=51 // pred_region
          %s327 = smul.u32 4, %s21
          %p328 = scmp.lt.s32.totalorder %s327, 7
          %s329 = scalar_select %p328, %s327, 7
          %s330 = smul.addr %s329, 8
          %s331 = scalar_lea.vmem %s1, %s330
          %s332 = smul.u32 4, %s21
        $region56: #{tpu_custom_call.1} parent=51 // pred_fallthru
          _
      $region52: #{tpu_custom_call.1} parent=5 // pred_fallthru
        _
      %p333 = scmp.le.s32.totalorder 1, %s21
      %p334 = scmp.lt.s32.totalorder %s21, 3
      %p335 = pnand %p333, %p334
      %p336 = pneg %p335
      // Predicated region
      $region57: #{tpu_custom_call.1} parent=5 // pred_check
        _
      $region58: #{tpu_custom_call.1} parent=5 // pred_check_branch
        %338 = sbr.rel (%p335) target = $region60
      $region59: #{tpu_custom_call.1} parent=5 // pred_region
        %s339 = ssub.s32 %s21, 1
        // Predicated region
        $region61: #{tpu_custom_call.1} parent=59 // pred_check
          %p340 = pneg %p42
        $region62: #{tpu_custom_call.1} parent=59 // pred_check_branch
          %342 = sbr.rel (%p340) target = $region64
        $region63: #{tpu_custom_call.1} parent=59 // pred_region
          %343 = dma.done [#allocation5], 16
        $region64: #{tpu_custom_call.1} parent=59 // pred_fallthru
          _
        // Predicated region
        $region65: #{tpu_custom_call.1} parent=59 // pred_check
          %p344 = pneg %p215
        $region66: #{tpu_custom_call.1} parent=59 // pred_check_branch
          %346 = sbr.rel (%p344) target = $region68
        $region67: #{tpu_custom_call.1} parent=59 // pred_region
          %347 = dma.done [#allocation3], 512
        $region68: #{tpu_custom_call.1} parent=59 // pred_fallthru
          _
        %348 = sfence
        %p349 = pneg %p42
        %p350 = pneg %p39
        %s351 = smul.u32 4, %s26
        %p352 = scmp.lt.s32.totalorder %s351, 7
        %s353 = scalar_select %p352, %s351, 7
        %s354 = smul.addr %s353, 8
        %s355 = scalar_lea.vmem %s1, %s354
        %p356 = pneg %p68
        %p357 = pneg %p65
        %p358 = pneg %p89
        %p359 = pneg %p86
        %p360 = pneg %p110
        %p361 = pneg %p107
        %p362 = pneg %p131
        %p363 = pneg %p128
        %p364 = pneg %p152
        %p365 = pneg %p149
        %p366 = pneg %p173
        %p367 = pneg %p170
        %p368 = pneg %p194
        %p369 = pneg %p191
        %p370 = pneg %p215
        %p371 = pneg %p212
        %p372 = pneg %p236
        %p373 = pneg %p233
        %p374 = pneg %p262
        %p375 = pneg %p259
        %s376 = sand.u32 %s249, 1
        %s377 = scalar_lea.sflag [#allocation4], %s376
        %s378 = sand.u32 %s249, 1
        %s379 = smul.addr %s378, 32
        %s380 = scalar_lea.vmem [#allocation7], %s379
        %s381 = smul.u32 4, %s26
        %p382 = scmp.lt.s32.totalorder %s381, 7
        %s383 = scalar_select %p382, %s381, 7
        %s384 = smul.addr %s383, 8
        %s385 = scalar_lea.vmem %s1, %s384
        %s386 = smul.u32 4, %s26
        %s387 = smul.u32 4, %s26
        %v388 = vld [vmem:[%s385] sm:$0xff]
        %v389 = vld [vmem:[%s385 + $0x8] sm:$0xff]
        %v390 = vld [vmem:[%s385 + $0x10] sm:$0xff]
        %v391 = vld [vmem:[%s385 + $0x18] sm:$0xff]
        %v392 = vld [vmem:[%s2] sm:$0xff]
        %v393 = vld [vmem:[%s2 + $0x8] sm:$0xff]
        %v394 = vld [vmem:[%s3] sm:$0x1]
        %v396 = vlaneseq
        %v397 = vshrl.u32 %v396, 7
        %v398 = vsub.s32 0, %v397
        %v399 = vrot.slane %v394, %v398
        %vm401 = vcmask 130048
        %v403 = vsel %vm401, %v388, 0
        %v406 = vsel %vm401, %v389, 0
        %v409 = vsel %vm401, %v390, 0
        %v412 = vsel %vm401, %v391, 0
        %414 = vmatprep.subr.mxu0 0.0
        %415 = vmatpush1.msra.mxu0 0.0
        %416 = vmatprep.subr.mxu0 0.0
        %417 = vmatpush1.msra.mxu0 0.0
        %418 = vmatprep.subr.mxu0 0.0
        %419 = vmatpush1.msra.mxu0 0.0
        %420 = vmatprep.subr.mxu0 0.0
        %421 = vmatpush1.msra.mxu0 0.0
        %422 = vmatprep.subr.mxu0 0.0
        %423 = vmatpush1.msra.mxu0 0.0
        %424 = vmatprep.subr.mxu0 0.0
        %425 = vmatpush1.msra.mxu0 0.0
        %426 = vmatprep.subr.mxu0 0.0
        %427 = vmatpush1.msra.mxu0 0.0
        %428 = vmatprep.subr.mxu0 0.0
        %429 = vmatpush1.msra.mxu0 0.0
        %430 = vmatprep.subr.mxu0 0.0
        %431 = vmatpush1.msra.mxu0 0.0
        %432 = vmatprep.subr.mxu0 0.0
        %433 = vmatpush1.msra.mxu0 0.0
        %434 = vmatprep.subr.mxu0 0.0
        %435 = vmatpush1.msra.mxu0 0.0
        %436 = vmatprep.subr.mxu0 0.0
        %437 = vmatpush1.msra.mxu0 0.0
        %438 = vmatprep.subr.mxu0 0.0
        %439 = vmatpush1.msra.mxu0 0.0
        %440 = vmatprep.subr.mxu0 0.0
        %441 = vmatpush1.msra.mxu0 0.0
        %442 = vmatprep.subr.mxu0 0.0
        %443 = vmatpush1.msra.mxu0 %v393
        %444 = vmatprep.subr.mxu0 0.0
        %445 = vmatpush1.msra.mxu0 %v392
        %446 = vmatprep.subr.mxu0 0.0
        %447 = vmatpush2.msra.mxu0 0.0
        %448 = vmatprep.subr.mxu0 0.0
        %449 = vmatpush2.msra.mxu0 0.0
        %450 = vmatprep.subr.mxu0 0.0
        %451 = vmatpush2.msra.mxu0 0.0
        %452 = vmatprep.subr.mxu0 0.0
        %453 = vmatpush2.msra.mxu0 0.0
        %454 = vmatprep.subr.mxu0 0.0
        %455 = vmatpush2.msra.mxu0 0.0
        %456 = vmatprep.subr.mxu0 0.0
        %457 = vmatpush2.msra.mxu0 0.0
        %458 = vmatprep.subr.mxu0 0.0
        %459 = vmatpush2.msra.mxu0 0.0
        %460 = vmatprep.subr.mxu0 0.0
        %461 = vmatpush2.msra.mxu0 0.0
        %462 = vmatprep.subr.mxu0 0.0
        %463 = vmatpush2.msra.mxu0 0.0
        %464 = vmatprep.subr.mxu0 0.0
        %465 = vmatpush2.msra.mxu0 0.0
        %466 = vmatprep.subr.mxu0 0.0
        %467 = vmatpush2.msra.mxu0 0.0
        %468 = vmatprep.subr.mxu0 0.0
        %469 = vmatpush2.msra.mxu0 0.0
        %470 = vmatprep.subr.mxu0 0.0
        %471 = vmatpush2.msra.mxu0 0.0
        %472 = vmatprep.subr.mxu0 0.0
        %473 = vmatpush2.msra.mxu0 0.0
        %474 = vmatprep.subr.mxu0 0.0
        %475 = vmatpush2.msra.mxu0 0.0
        %476 = vmatprep.subr.mxu0 0.0
        %477 = vmatpush2.msra.mxu0 0.0
        %478 = vmatprep.mubr.f32.mxu0 0.0
        %479 = vmatmul.mubr.f32.gmra.mxu0 %v403
        %v480 = vpop.f32.mrf.mxu0
        %v481 = vadd.f32 %v399, %v480
        %v482 = vpop.f32.mrf.mxu0
        %483 = vmatprep.mubr.f32.mxu0 0.0
        %484 = vmatmul.mubr.f32.gmra.mxu0 %v406
        %v485 = vpop.f32.mrf.mxu0
        %v486 = vadd.f32 %v399, %v485
        %v487 = vpop.f32.mrf.mxu0
        %488 = vmatprep.mubr.f32.mxu0 0.0
        %489 = vmatmul.mubr.f32.gmra.mxu0 %v409
        %v490 = vpop.f32.mrf.mxu0
        %v491 = vadd.f32 %v399, %v490
        %v492 = vpop.f32.mrf.mxu0
        %493 = vmatprep.mubr.f32.mxu0 0.0
        %494 = vmatmul.mubr.f32.gmra.mxu0 %v412
        %v495 = vpop.f32.mrf.mxu0
        %v496 = vadd.f32 %v399, %v495
        %v497 = vpop.f32.mrf.mxu0
        %498 = vdwg.mxu0
        %s499 = sld [smem:[#allocation2]]
        %vm500 = vcmp.gt.f32.partialorder %v481, 0.0
        %vm501 = vcmp.gt.f32.partialorder %v486, 0.0
        %vm502 = vcmp.gt.f32.partialorder %v491, 0.0
        %vm503 = vcmp.gt.f32.partialorder %v496, 0.0
        %v504 = vstv %s499
        %v505 = vmul.f32 %v504, %v481
        %v506 = vmul.f32 %v504, %v486
        %v507 = vmul.f32 %v504, %v491
        %v508 = vmul.f32 %v504, %v496
        %v509 = vsel %vm500, %v481, %v505
        %v510 = vsel %vm501, %v486, %v506
        %v511 = vsel %vm502, %v491, %v507
        %v512 = vsel %vm503, %v496, %v508
        %v513 = vld [vmem:[%s4] sm:$0xff]
        %v514 = vld [vmem:[%s4 + $0x8] sm:$0xff]
        %v515 = vld [vmem:[%s4 + $0x10] sm:$0xff]
        %v516 = vld [vmem:[%s4 + $0x18] sm:$0xff]
        %v517 = vld [vmem:[%s5] sm:$0x1]
        %v519 = vlaneseq
        %v520 = vshrl.u32 %v519, 7
        %v521 = vsub.s32 0, %v520
        %v522 = vrot.slane %v517, %v521
        %vm524 = vcmask 261120
        %v526 = vsel %vm524, %v509, 0
        %v529 = vsel %vm524, %v510, 0
        %v532 = vsel %vm524, %v511, 0
        %v535 = vsel %vm524, %v512, 0
        %537 = vmatprep.subr.mxu0 0.0
        %538 = vmatpush1.msra.mxu0 0.0
        %539 = vmatprep.subr.mxu0 0.0
        %540 = vmatpush1.msra.mxu0 0.0
        %541 = vmatprep.subr.mxu0 0.0
        %542 = vmatpush1.msra.mxu0 0.0
        %543 = vmatprep.subr.mxu0 0.0
        %544 = vmatpush1.msra.mxu0 0.0
        %545 = vmatprep.subr.mxu0 0.0
        %546 = vmatpush1.msra.mxu0 0.0
        %547 = vmatprep.subr.mxu0 0.0
        %548 = vmatpush1.msra.mxu0 0.0
        %549 = vmatprep.subr.mxu0 0.0
        %550 = vmatpush1.msra.mxu0 0.0
        %551 = vmatprep.subr.mxu0 0.0
        %552 = vmatpush1.msra.mxu0 0.0
        %553 = vmatprep.subr.mxu0 0.0
        %554 = vmatpush1.msra.mxu0 0.0
        %555 = vmatprep.subr.mxu0 0.0
        %556 = vmatpush1.msra.mxu0 0.0
        %557 = vmatprep.subr.mxu0 0.0
        %558 = vmatpush1.msra.mxu0 0.0
        %559 = vmatprep.subr.mxu0 0.0
        %560 = vmatpush1.msra.mxu0 0.0
        %561 = vmatprep.subr.mxu0 0.0
        %562 = vmatpush1.msra.mxu0 %v516
        %563 = vmatprep.subr.mxu0 0.0
        %564 = vmatpush1.msra.mxu0 %v515
        %565 = vmatprep.subr.mxu0 0.0
        %566 = vmatpush1.msra.mxu0 %v514
        %567 = vmatprep.subr.mxu0 0.0
        %568 = vmatpush1.msra.mxu0 %v513
        %569 = vmatprep.subr.mxu0 0.0
        %570 = vmatpush2.msra.mxu0 0.0
        %571 = vmatprep.subr.mxu0 0.0
        %572 = vmatpush2.msra.mxu0 0.0
        %573 = vmatprep.subr.mxu0 0.0
        %574 = vmatpush2.msra.mxu0 0.0
        %575 = vmatprep.subr.mxu0 0.0
        %576 = vmatpush2.msra.mxu0 0.0
        %577 = vmatprep.subr.mxu0 0.0
        %578 = vmatpush2.msra.mxu0 0.0
        %579 = vmatprep.subr.mxu0 0.0
        %580 = vmatpush2.msra.mxu0 0.0
        %581 = vmatprep.subr.mxu0 0.0
        %582 = vmatpush2.msra.mxu0 0.0
        %583 = vmatprep.subr.mxu0 0.0
        %584 = vmatpush2.msra.mxu0 0.0
        %585 = vmatprep.subr.mxu0 0.0
        %586 = vmatpush2.msra.mxu0 0.0
        %587 = vmatprep.subr.mxu0 0.0
        %588 = vmatpush2.msra.mxu0 0.0
        %589 = vmatprep.subr.mxu0 0.0
        %590 = vmatpush2.msra.mxu0 0.0
        %591 = vmatprep.subr.mxu0 0.0
        %592 = vmatpush2.msra.mxu0 0.0
        %593 = vmatprep.subr.mxu0 0.0
        %594 = vmatpush2.msra.mxu0 0.0
        %595 = vmatprep.subr.mxu0 0.0
        %596 = vmatpush2.msra.mxu0 0.0
        %597 = vmatprep.subr.mxu0 0.0
        %598 = vmatpush2.msra.mxu0 0.0
        %599 = vmatprep.subr.mxu0 0.0
        %600 = vmatpush2.msra.mxu0 0.0
        %601 = vmatprep.mubr.f32.mxu0 0.0
        %602 = vmatmul.mubr.f32.gmra.mxu0 %v526
        %v603 = vpop.f32.mrf.mxu0
        %v604 = vadd.f32 %v522, %v603
        %v605 = vpop.f32.mrf.mxu0
        %606 = vmatprep.mubr.f32.mxu0 0.0
        %607 = vmatmul.mubr.f32.gmra.mxu0 %v529
        %v608 = vpop.f32.mrf.mxu0
        %v609 = vadd.f32 %v522, %v608
        %v610 = vpop.f32.mrf.mxu0
        %611 = vmatprep.mubr.f32.mxu0 0.0
        %612 = vmatmul.mubr.f32.gmra.mxu0 %v532
        %v613 = vpop.f32.mrf.mxu0
        %v614 = vadd.f32 %v522, %v613
        %v615 = vpop.f32.mrf.mxu0
        %616 = vmatprep.mubr.f32.mxu0 0.0
        %617 = vmatmul.mubr.f32.gmra.mxu0 %v535
        %v618 = vpop.f32.mrf.mxu0
        %v619 = vadd.f32 %v522, %v618
        %v620 = vpop.f32.mrf.mxu0
        %621 = vdwg.mxu0
        %s622 = sld [smem:[#allocation2 + $0x1]]
        %vm623 = vcmp.gt.f32.partialorder %v604, 0.0
        %vm624 = vcmp.gt.f32.partialorder %v609, 0.0
        %vm625 = vcmp.gt.f32.partialorder %v614, 0.0
        %vm626 = vcmp.gt.f32.partialorder %v619, 0.0
        %v627 = vstv %s622
        %v628 = vmul.f32 %v627, %v604
        %v629 = vmul.f32 %v627, %v609
        %v630 = vmul.f32 %v627, %v614
        %v631 = vmul.f32 %v627, %v619
        %v632 = vsel %vm623, %v604, %v628
        %v633 = vsel %vm624, %v609, %v629
        %v634 = vsel %vm625, %v614, %v630
        %v635 = vsel %vm626, %v619, %v631
        %v636 = vld [vmem:[%s6] sm:$0xff]
        %v637 = vld [vmem:[%s6 + $0x8] sm:$0xff]
        %v638 = vld [vmem:[%s6 + $0x10] sm:$0xff]
        %v639 = vld [vmem:[%s6 + $0x18] sm:$0xff]
        %v640 = vld [vmem:[%s7] sm:$0x1]
        %v642 = vlaneseq
        %v643 = vshrl.u32 %v642, 7
        %v644 = vsub.s32 0, %v643
        %v645 = vrot.slane %v640, %v644
        %v648 = vsel %vm524, %v632, 0
        %v651 = vsel %vm524, %v633, 0
        %v654 = vsel %vm524, %v634, 0
        %v657 = vsel %vm524, %v635, 0
        %659 = vmatprep.subr.mxu0 0.0
        %660 = vmatpush1.msra.mxu0 0.0
        %661 = vmatprep.subr.mxu0 0.0
        %662 = vmatpush1.msra.mxu0 0.0
        %663 = vmatprep.subr.mxu0 0.0
        %664 = vmatpush1.msra.mxu0 0.0
        %665 = vmatprep.subr.mxu0 0.0
        %666 = vmatpush1.msra.mxu0 0.0
        %667 = vmatprep.subr.mxu0 0.0
        %668 = vmatpush1.msra.mxu0 0.0
        %669 = vmatprep.subr.mxu0 0.0
        %670 = vmatpush1.msra.mxu0 0.0
        %671 = vmatprep.subr.mxu0 0.0
        %672 = vmatpush1.msra.mxu0 0.0
        %673 = vmatprep.subr.mxu0 0.0
        %674 = vmatpush1.msra.mxu0 0.0
        %675 = vmatprep.subr.mxu0 0.0
        %676 = vmatpush1.msra.mxu0 0.0
        %677 = vmatprep.subr.mxu0 0.0
        %678 = vmatpush1.msra.mxu0 0.0
        %679 = vmatprep.subr.mxu0 0.0
        %680 = vmatpush1.msra.mxu0 0.0
        %681 = vmatprep.subr.mxu0 0.0
        %682 = vmatpush1.msra.mxu0 0.0
        %683 = vmatprep.subr.mxu0 0.0
        %684 = vmatpush1.msra.mxu0 %v639
        %685 = vmatprep.subr.mxu0 0.0
        %686 = vmatpush1.msra.mxu0 %v638
        %687 = vmatprep.subr.mxu0 0.0
        %688 = vmatpush1.msra.mxu0 %v637
        %689 = vmatprep.subr.mxu0 0.0
        %690 = vmatpush1.msra.mxu0 %v636
        %691 = vmatprep.subr.mxu0 0.0
        %692 = vmatpush2.msra.mxu0 0.0
        %693 = vmatprep.subr.mxu0 0.0
        %694 = vmatpush2.msra.mxu0 0.0
        %695 = vmatprep.subr.mxu0 0.0
        %696 = vmatpush2.msra.mxu0 0.0
        %697 = vmatprep.subr.mxu0 0.0
        %698 = vmatpush2.msra.mxu0 0.0
        %699 = vmatprep.subr.mxu0 0.0
        %700 = vmatpush2.msra.mxu0 0.0
        %701 = vmatprep.subr.mxu0 0.0
        %702 = vmatpush2.msra.mxu0 0.0
        %703 = vmatprep.subr.mxu0 0.0
        %704 = vmatpush2.msra.mxu0 0.0
        %705 = vmatprep.subr.mxu0 0.0
        %706 = vmatpush2.msra.mxu0 0.0
        %707 = vmatprep.subr.mxu0 0.0
        %708 = vmatpush2.msra.mxu0 0.0
        %709 = vmatprep.subr.mxu0 0.0
        %710 = vmatpush2.msra.mxu0 0.0
        %711 = vmatprep.subr.mxu0 0.0
        %712 = vmatpush2.msra.mxu0 0.0
        %713 = vmatprep.subr.mxu0 0.0
        %714 = vmatpush2.msra.mxu0 0.0
        %715 = vmatprep.subr.mxu0 0.0
        %716 = vmatpush2.msra.mxu0 0.0
        %717 = vmatprep.subr.mxu0 0.0
        %718 = vmatpush2.msra.mxu0 0.0
        %719 = vmatprep.subr.mxu0 0.0
        %720 = vmatpush2.msra.mxu0 0.0
        %721 = vmatprep.subr.mxu0 0.0
        %722 = vmatpush2.msra.mxu0 0.0
        %723 = vmatprep.mubr.f32.mxu0 0.0
        %724 = vmatmul.mubr.f32.gmra.mxu0 %v648
        %v725 = vpop.f32.mrf.mxu0
        %v726 = vadd.f32 %v645, %v725
        %v727 = vpop.f32.mrf.mxu0
        %728 = vmatprep.mubr.f32.mxu0 0.0
        %729 = vmatmul.mubr.f32.gmra.mxu0 %v651
        %v730 = vpop.f32.mrf.mxu0
        %v731 = vadd.f32 %v645, %v730
        %v732 = vpop.f32.mrf.mxu0
        %733 = vmatprep.mubr.f32.mxu0 0.0
        %734 = vmatmul.mubr.f32.gmra.mxu0 %v654
        %v735 = vpop.f32.mrf.mxu0
        %v736 = vadd.f32 %v645, %v735
        %v737 = vpop.f32.mrf.mxu0
        %738 = vmatprep.mubr.f32.mxu0 0.0
        %739 = vmatmul.mubr.f32.gmra.mxu0 %v657
        %v740 = vpop.f32.mrf.mxu0
        %v741 = vadd.f32 %v645, %v740
        %v742 = vpop.f32.mrf.mxu0
        %743 = vdwg.mxu0
        %s744 = sld [smem:[#allocation2 + $0x2]]
        %vm745 = vcmp.gt.f32.partialorder %v726, 0.0
        %vm746 = vcmp.gt.f32.partialorder %v731, 0.0
        %vm747 = vcmp.gt.f32.partialorder %v736, 0.0
        %vm748 = vcmp.gt.f32.partialorder %v741, 0.0
        %v749 = vstv %s744
        %v750 = vmul.f32 %v749, %v726
        %v751 = vmul.f32 %v749, %v731
        %v752 = vmul.f32 %v749, %v736
        %v753 = vmul.f32 %v749, %v741
        %v754 = vsel %vm745, %v726, %v750
        %v755 = vsel %vm746, %v731, %v751
        %v756 = vsel %vm747, %v736, %v752
        %v757 = vsel %vm748, %v741, %v753
        %v758 = vld [vmem:[#allocation6] sm:$0xff]
        %v759 = vld [vmem:[#allocation6 + $0x8] sm:$0xff]
        %v760 = vld [vmem:[#allocation6 + $0x10] sm:$0xff]
        %v761 = vld [vmem:[#allocation6 + $0x18] sm:$0xff]
        %v762 = vld [vmem:[%s9] sm:$0x1]
        %v764 = vlaneseq
        %v765 = vshrl.u32 %v764, 7
        %v766 = vsub.s32 0, %v765
        %v767 = vrot.slane %v762, %v766
        %v770 = vsel %vm524, %v754, 0
        %v773 = vsel %vm524, %v755, 0
        %v776 = vsel %vm524, %v756, 0
        %v779 = vsel %vm524, %v757, 0
        %781 = vmatprep.subr.mxu0 0.0
        %782 = vmatpush1.msra.mxu0 0.0
        %783 = vmatprep.subr.mxu0 0.0
        %784 = vmatpush1.msra.mxu0 0.0
        %785 = vmatprep.subr.mxu0 0.0
        %786 = vmatpush1.msra.mxu0 0.0
        %787 = vmatprep.subr.mxu0 0.0
        %788 = vmatpush1.msra.mxu0 0.0
        %789 = vmatprep.subr.mxu0 0.0
        %790 = vmatpush1.msra.mxu0 0.0
        %791 = vmatprep.subr.mxu0 0.0
        %792 = vmatpush1.msra.mxu0 0.0
        %793 = vmatprep.subr.mxu0 0.0
        %794 = vmatpush1.msra.mxu0 0.0
        %795 = vmatprep.subr.mxu0 0.0
        %796 = vmatpush1.msra.mxu0 0.0
        %797 = vmatprep.subr.mxu0 0.0
        %798 = vmatpush1.msra.mxu0 0.0
        %799 = vmatprep.subr.mxu0 0.0
        %800 = vmatpush1.msra.mxu0 0.0
        %801 = vmatprep.subr.mxu0 0.0
        %802 = vmatpush1.msra.mxu0 0.0
        %803 = vmatprep.subr.mxu0 0.0
        %804 = vmatpush1.msra.mxu0 0.0
        %805 = vmatprep.subr.mxu0 0.0
        %806 = vmatpush1.msra.mxu0 %v761
        %807 = vmatprep.subr.mxu0 0.0
        %808 = vmatpush1.msra.mxu0 %v760
        %809 = vmatprep.subr.mxu0 0.0
        %810 = vmatpush1.msra.mxu0 %v759
        %811 = vmatprep.subr.mxu0 0.0
        %812 = vmatpush1.msra.mxu0 %v758
        %813 = vmatprep.subr.mxu0 0.0
        %814 = vmatpush2.msra.mxu0 0.0
        %815 = vmatprep.subr.mxu0 0.0
        %816 = vmatpush2.msra.mxu0 0.0
        %817 = vmatprep.subr.mxu0 0.0
        %818 = vmatpush2.msra.mxu0 0.0
        %819 = vmatprep.subr.mxu0 0.0
        %820 = vmatpush2.msra.mxu0 0.0
        %821 = vmatprep.subr.mxu0 0.0
        %822 = vmatpush2.msra.mxu0 0.0
        %823 = vmatprep.subr.mxu0 0.0
        %824 = vmatpush2.msra.mxu0 0.0
        %825 = vmatprep.subr.mxu0 0.0
        %826 = vmatpush2.msra.mxu0 0.0
        %827 = vmatprep.subr.mxu0 0.0
        %828 = vmatpush2.msra.mxu0 0.0
        %829 = vmatprep.subr.mxu0 0.0
        %830 = vmatpush2.msra.mxu0 0.0
        %831 = vmatprep.subr.mxu0 0.0
        %832 = vmatpush2.msra.mxu0 0.0
        %833 = vmatprep.subr.mxu0 0.0
        %834 = vmatpush2.msra.mxu0 0.0
        %835 = vmatprep.subr.mxu0 0.0
        %836 = vmatpush2.msra.mxu0 0.0
        %837 = vmatprep.subr.mxu0 0.0
        %838 = vmatpush2.msra.mxu0 0.0
        %839 = vmatprep.subr.mxu0 0.0
        %840 = vmatpush2.msra.mxu0 0.0
        %841 = vmatprep.subr.mxu0 0.0
        %842 = vmatpush2.msra.mxu0 0.0
        %843 = vmatprep.subr.mxu0 0.0
        %844 = vmatpush2.msra.mxu0 0.0
        %845 = vmatprep.mubr.f32.mxu0 0.0
        %846 = vmatmul.mubr.f32.gmra.mxu0 %v770
        %v847 = vpop.f32.mrf.mxu0
        %v848 = vadd.f32 %v767, %v847
        %v849 = vpop.f32.mrf.mxu0
        %850 = vmatprep.mubr.f32.mxu0 0.0
        %851 = vmatmul.mubr.f32.gmra.mxu0 %v773
        %v852 = vpop.f32.mrf.mxu0
        %v853 = vadd.f32 %v767, %v852
        %v854 = vpop.f32.mrf.mxu0
        %855 = vmatprep.mubr.f32.mxu0 0.0
        %856 = vmatmul.mubr.f32.gmra.mxu0 %v776
        %v857 = vpop.f32.mrf.mxu0
        %v858 = vadd.f32 %v767, %v857
        %v859 = vpop.f32.mrf.mxu0
        %860 = vmatprep.mubr.f32.mxu0 0.0
        %861 = vmatmul.mubr.f32.gmra.mxu0 %v779
        %v862 = vpop.f32.mrf.mxu0
        %v863 = vadd.f32 %v767, %v862
        %v864 = vpop.f32.mrf.mxu0
        %865 = vdwg.mxu0
        %v866 = vlaneseq
        %v867 = vand.u32 %v866, 127
        %872 = vrot.lane.b32.xlu0 %v848, 127
        %v873 = vpop.permute.xlu0 %872
        %874 = vrot.lane.b32.xlu0 %v853, 127
        %v875 = vpop.permute.xlu0 %874
        %876 = vrot.lane.b32.xlu0 %v858, 127
        %v877 = vpop.permute.xlu0 %876
        %878 = vrot.lane.b32.xlu0 %v863, 127
        %v879 = vpop.permute.xlu0 %878
        %v884 = vsub.f32 %v848, %v873
        %v885 = vsub.f32 %v853, %v875
        %v886 = vsub.f32 %v858, %v877
        %v887 = vsub.f32 %v863, %v879
        %v888 = vmul.f32 %v884, 1.442695
        %v889 = vpow.pop %v888
        %v890 = vmul.f32 %v885, 1.442695
        %v891 = vpow.pop %v890
        %v892 = vmul.f32 %v886, 1.442695
        %v893 = vpow.pop %v892
        %v894 = vmul.f32 %v887, 1.442695
        %v895 = vpow.pop %v894
        %v896 = vadd.f32 %v889, 1.0
        %v897 = vadd.f32 %v891, 1.0
        %v898 = vadd.f32 %v893, 1.0
        %v899 = vadd.f32 %v895, 1.0
        %v900 = vrcp.pop %v896
        %v901 = vmul.f32 1.0, %v900
        %v902 = vrcp.pop %v897
        %v903 = vmul.f32 1.0, %v902
        %v904 = vrcp.pop %v898
        %v905 = vmul.f32 1.0, %v904
        %v906 = vrcp.pop %v899
        %v907 = vmul.f32 1.0, %v906
        %v908 = vsub.f32 1.0, %v901
        %v909 = vsub.f32 1.0, %v903
        %v910 = vsub.f32 1.0, %v905
        %v911 = vsub.f32 1.0, %v907
        %vm912 = vcmp.eq.s32.totalorder %v867, 64
        %vm913 = vcmp.eq.s32.totalorder %v867, 65
        %915 = vset.pattern.permute.xlu0 0
        %916 = vperm.xlu0 %915, %v901
        %v917 = vpop.permute.xlu0 %916
        %920 = vset.pattern.permute.xlu0 0
        %921 = vperm.xlu0 %920, %v903
        %v922 = vpop.permute.xlu0 %921
        %925 = vset.pattern.permute.xlu0 0
        %926 = vperm.xlu0 %925, %v905
        %v927 = vpop.permute.xlu0 %926
        %930 = vset.pattern.permute.xlu0 0
        %931 = vperm.xlu0 %930, %v907
        %v932 = vpop.permute.xlu0 %931
        %v934 = vsel %vm913, %v917, %v848
        %v935 = vsel %vm913, %v922, %v853
        %v936 = vsel %vm913, %v927, %v858
        %v937 = vsel %vm913, %v932, %v863
        %939 = vset.pattern.permute.xlu0 0
        %940 = vperm.xlu0 %939, %v908
        %v941 = vpop.permute.xlu0 %940
        %944 = vset.pattern.permute.xlu0 0
        %945 = vperm.xlu0 %944, %v909
        %v946 = vpop.permute.xlu0 %945
        %949 = vset.pattern.permute.xlu0 0
        %950 = vperm.xlu0 %949, %v910
        %v951 = vpop.permute.xlu0 %950
        %954 = vset.pattern.permute.xlu0 0
        %955 = vperm.xlu0 %954, %v911
        %v956 = vpop.permute.xlu0 %955
        %v958 = vsel %vm912, %v941, %v934
        %v959 = vsel %vm912, %v946, %v935
        %v960 = vsel %vm912, %v951, %v936
        %v961 = vsel %vm912, %v956, %v937
        %962 = vst [vmem:[%s380] sm:$0xff] %v958
        %963 = vst [vmem:[%s380 + $0x8] sm:$0xff] %v959
        %964 = vst [vmem:[%s380 + $0x10] sm:$0xff] %v960
        %965 = vst [vmem:[%s380 + $0x18] sm:$0xff] %v961
        %s966 = sand.u32 %s249, 1
        %s967 = scalar_lea.sflag [#allocation4], %s966
        %s968 = sand.u32 %s249, 1
        %s969 = smul.addr %s968, 32
        %s970 = scalar_lea.vmem [#allocation7], %s969
        // Predicated region
        $region69: #{tpu_custom_call.1} parent=59 // pred_check
          %p971 = pneg %p259
        $region70: #{tpu_custom_call.1} parent=59 // pred_check_branch
          %973 = sbr.rel (%p971) target = $region72
        $region71: #{tpu_custom_call.1} parent=59 // pred_region
          %s974 = smul.u32 4, %s26
          %s976 = ssub.s32 512, 512
          %977 = vsyncadd %s967, %s976
          %s978 = smul.addr %s974, 128
          %s979 = scalar_lea.hbm %s10, %s978
          %s980 = sshll.u32 %s970, 4
          %s981 = int_to_ptr.vmem [resolvable:$true] %s980
          %986 = dma.vmem_to_hbm [thread:$0]  %s981, 512, %s979, %s967, 128, 128, 8
        $region72: #{tpu_custom_call.1} parent=59 // pred_fallthru
          _
      $region60: #{tpu_custom_call.1} parent=5 // pred_fallthru
        _
      %p987 = scmp.le.s32.totalorder 2, %s21
      // Predicated region
      $region73: #{tpu_custom_call.1} parent=5 // pred_check
        %p988 = pneg %p987
      $region74: #{tpu_custom_call.1} parent=5 // pred_check_branch
        %990 = sbr.rel (%p988) target = $region76
      $region75: #{tpu_custom_call.1} parent=5 // pred_region
        %s991 = ssub.s32 %s21, 2
        // Predicated region
        $region77: #{tpu_custom_call.1} parent=75 // pred_check
          %p992 = pneg %p265
        $region78: #{tpu_custom_call.1} parent=75 // pred_check_branch
          %994 = sbr.rel (%p992) target = $region80
        $region79: #{tpu_custom_call.1} parent=75 // pred_region
          %s995 = sand.u32 %s250, 1
          %s996 = scalar_lea.sflag [#allocation4], %s995
          %s997 = sand.u32 %s250, 1
          %s998 = smul.addr %s997, 32
          %s999 = scalar_lea.vmem [#allocation7], %s998
          %1000 = dma.done %s996, 512
        $region80: #{tpu_custom_call.1} parent=75 // pred_fallthru
          _
      $region76: #{tpu_custom_call.1} parent=5 // pred_fallthru
        _
    $region6: #{tpu_custom_call.1} parent=1 // loop_footer
      %s25 = sadd.s32 1, %s21
    $region7: #{tpu_custom_call.1} parent=1 // loop_footer_branch
      %20 = sbr.rel target = $region3
    $region8: #{tpu_custom_call.1} parent=1 // loop_exit
      _
    %1001 = vsyncpa [#allocation3], 1
    %s1002 = scalar_lea.sflag [#allocation3], 1
    %1003 = vsyncpa %s1002, 1
    %1004 = vsyncpa [#allocation4], 1
    %s1005 = scalar_lea.sflag [#allocation4], 1
    %1006 = vsyncpa %s1005, 1
    %1007 = vsyncpa [#allocation5], 1
    %s1008 = scalar_lea.sflag [#allocation5], 1
    %1009 = vsyncpa %s1008, 1

</llo_original>
